<compile_context>
chip_gen: v7x
topology: tpu7x:2x2x1
jax: 0.10.0
libtpu: 0.0.40
codegen_flags: <defaults>
</compile_context>

<pallas_src>
import functools

import jax
import jax.numpy as jnp
from jax.experimental import pallas as pl
from jax.experimental.pallas import tpu as pltpu


def _head_kernel(feat_ref, w_ref, b_ref, out_ref, *, inv_hw):
    # feat_ref: (TILE_N, C, HW)   w_ref: (C, K_pad)   b_ref: (1, K_pad)
    f = jnp.maximum(feat_ref[...], 0.0)            # ReLU (VPU)
    pooled = jnp.sum(f, axis=2) * inv_hw           # global avg pool -> (TILE_N, C)
    out_ref[...] = (jnp.dot(pooled, w_ref[...],
                            preferred_element_type=jnp.float32)
                    + b_ref[...]).astype(out_ref.dtype)


def multi_task_head(feature_nchw, w0, b0, w1, b1, w2, b2, *, tile_n=None):
    """feature_nchw: (N, planes, featmap, featmap) float32 (NCHW, as in PyTorch).

    Weights are (planes, classes) = PyTorch Linear weight transposed.
    Returns (out1, out2, out3) matching the PyTorch module's forward.
    """
    N, C, H, W = feature_nchw.shape
    HW = H * W

    # Free reshape (no HBM-materialized transpose): NCHW -> (N, C, H*W).
    feat = feature_nchw.reshape(N, C, HW)

    k0, k1, k2 = w0.shape[1], w1.shape[1], w2.shape[1]
    K = k0 + k1 + k2
    K_pad = max(128, ((K + 127) // 128) * 128)     # lane-dense fused output

    # Fuse the three heads into one (C, K_pad) weight and (1, K_pad) bias.
    w_cat = jnp.pad(jnp.concatenate([w0, w1, w2], axis=1),
                    ((0, 0), (0, K_pad - K)))
    b_cat = jnp.pad(jnp.concatenate([b0, b1, b2]).reshape(1, K),
                    ((0, 0), (0, K_pad - K)))

    # VMEM footprint per batch sample (sublane padding on C, lane padding on HW).
    bytes_per_sample = (-(-C // 8) * 8) * (-(-HW // 128) * 128) * 4
    if tile_n is None:
        budget = 8 << 20                           # per input buffer (x2 for double-buffer)
        tile_n = max(1, min(N, budget // bytes_per_sample))
    if tile_n < N:
        # Keep the output block's second-to-last dim a multiple of 8.
        tile_n = max(8, (tile_n // 8) * 8)
        tile_n = min(tile_n, N) if N % tile_n == 0 else tile_n

    n_pad = -(-N // tile_n) * tile_n
    if n_pad != N:
        # Zero rows pool to zero -> logits = bias; sliced away below.
        feat = jnp.pad(feat, ((0, n_pad - N), (0, 0), (0, 0)))

    out = pl.pallas_call(
        functools.partial(_head_kernel, inv_hw=1.0 / HW),
        out_shape=jax.ShapeDtypeStruct((n_pad, K_pad), jnp.float32),
        grid=(n_pad // tile_n,),
        in_specs=[
            pl.BlockSpec((tile_n, C, HW), lambda i: (i, 0, 0)),
            pl.BlockSpec((C, K_pad), lambda i: (0, 0)),   # resident across steps
            pl.BlockSpec((1, K_pad), lambda i: (0, 0)),   # resident across steps
        ],
        out_specs=pl.BlockSpec((tile_n, K_pad), lambda i: (i, 0)),
        compiler_params=pltpu.CompilerParams(
            dimension_semantics=("parallel",),            # megacore on v7x
            vmem_limit_bytes=32 << 20,                    # fits v7x's 64 MiB VMEM
        ),
    )(feat, w_cat, b_cat)

    out1 = out[:N, :k0]
    out2 = out[:N, k0:k0 + k1]
    out3 = out[:N, k0 + k1:K]
    return out1, out2, out3


if __name__ == "__main__":
    # Small, forward-consistent shapes:
    #   batch N=2, planes=32 (stand-in for 512/2048), featmap=4 (inmap=128 -> 128//32)
    #   multi_classes = (3, 5), binary head = 2 classes.
    N, planes, featmap = 2, 32, 4
    multi_classes = (3, 5)

    key = jax.random.PRNGKey(0)
    k_feat, k0, k1, k2 = jax.random.split(key, 4)

    # Backbone feature map (what `self.base(x)` would output), NCHW.
    feature = jax.random.normal(k_feat, (N, planes, featmap, featmap), jnp.float32)

    # Linear heads: PyTorch init is weight ~ N(0, 0.01), bias = 0 (cls0, cls1);
    # cls2 uses the same deterministic scheme for this synthetic test.
    w0 = 0.01 * jax.random.normal(k0, (planes, multi_classes[0]), jnp.float32)
    b0 = jnp.zeros((multi_classes[0],), jnp.float32)
    w1 = 0.01 * jax.random.normal(k1, (planes, multi_classes[1]), jnp.float32)
    b1 = jnp.zeros((multi_classes[1],), jnp.float32)
    w2 = 0.01 * jax.random.normal(k2, (planes, 2), jnp.float32)
    b2 = jnp.zeros((2,), jnp.float32)

    out1, out2, out3 = multi_task_head(feature, w0, b0, w1, b1, w2, b2)
    jax.block_until_ready((out1, out2, out3))

    # Pure-JAX reference check of the head semantics.
    ref_pooled = jnp.mean(jnp.maximum(feature, 0.0), axis=(2, 3))   # (N, planes)
    r1 = ref_pooled @ w0 + b0
    r2 = ref_pooled @ w1 + b1
    r3 = ref_pooled @ w2 + b2
    assert jnp.allclose(out1, r1, atol=1e-5), "out1 mismatch"
    assert jnp.allclose(out2, r2, atol=1e-5), "out2 mismatch"
    assert jnp.allclose(out3, r3, atol=1e-5), "out3 mismatch"

    print("KERNEL_OK")
</pallas_src>

<mosaic_0001>
module attributes {stable_mosaic.version = 11 : i64} {
  func.func @_head_kernel(%arg0: i32, %arg1: memref<2x32x16xf32, #tpu.memory_space<vmem>>, %arg2: memref<32x128xf32, #tpu.memory_space<vmem>>, %arg3: memref<1x128xf32, #tpu.memory_space<vmem>>, %arg4: memref<2x128xf32, #tpu.memory_space<vmem>>) attributes {dimension_semantics = [#tpu.dimension_semantics<parallel>], iteration_bounds = array<i64: 1>, scalar_prefetch = 0 : i64, scratch_operands = 0 : i64, tpu.core_type = #tpu.core_type<tc>, window_params = [{transform_indices = @transform_0, window_bounds = array<i64: 2, 32, 16>}, {pipeline_mode = #tpu.pipeline_mode<synchronous>, transform_indices = @transform_1, window_bounds = array<i64: 32, 128>}, {pipeline_mode = #tpu.pipeline_mode<synchronous>, transform_indices = @transform_2, window_bounds = array<i64: 1, 128>}, {transform_indices = @transform_3, window_bounds = array<i64: 2, 128>}]} {
    %c0 = arith.constant 0 : index
    %c0_0 = arith.constant 0 : index
    %c0_1 = arith.constant 0 : index
    %0 = vector.load %arg1[%c0, %c0_0, %c0_1] : memref<2x32x16xf32, #tpu.memory_space<vmem>>, vector<2x32x16xf32>
    %cst = arith.constant 0.000000e+00 : f32
    %1 = vector.broadcast %cst : f32 to vector<2x32x16xf32>
    %2 = arith.maximumf %0, %1 : vector<2x32x16xf32>
    %cst_2 = arith.constant dense<0.000000e+00> : vector<2x32xf32>
    %3 = vector.multi_reduction <add>, %2, %cst_2 [2] : vector<2x32x16xf32> to vector<2x32xf32>
    %cst_3 = arith.constant 6.250000e-02 : f32
    %4 = vector.broadcast %cst_3 : f32 to vector<2x32xf32>
    %5 = arith.mulf %3, %4 : vector<2x32xf32>
    %c0_4 = arith.constant 0 : index
    %c0_5 = arith.constant 0 : index
    %6 = vector.load %arg2[%c0_4, %c0_5] : memref<32x128xf32, #tpu.memory_space<vmem>>, vector<32x128xf32>
    %cst_6 = arith.constant dense<0.000000e+00> : vector<2x128xf32>
    %7 = tpu.matmul %5, %6, %cst_6 {dimension_numbers = #tpu.dot_dimension_numbers<[1], [0], [0], [1], [0, 0, 1, 1], [], []>} : vector<2x32xf32>, vector<32x128xf32>, vector<2x128xf32> -> vector<2x128xf32>
    %c0_7 = arith.constant 0 : index
    %c0_8 = arith.constant 0 : index
    %8 = vector.load %arg3[%c0_7, %c0_8] : memref<1x128xf32, #tpu.memory_space<vmem>>, vector<1x128xf32>
    %9 = vector.broadcast %8 : vector<1x128xf32> to vector<2x128xf32>
    %10 = arith.addf %7, %9 : vector<2x128xf32>
    %c0_9 = arith.constant 0 : index
    %c0_10 = arith.constant 0 : index
    %11 = vector.load %arg4[%c0_9, %c0_10] : memref<2x128xf32, #tpu.memory_space<vmem>>, vector<2x128xf32>
    tpu.vector_store %arg4[%c0_9, %c0_10], %10 {strides = array<i32>} : memref<2x128xf32, #tpu.memory_space<vmem>>, vector<2x128xf32>,
    return
  }
  func.func @transform_0(%arg0: i32) -> (i32, i32, i32) {
    %c0_i32 = arith.constant 0 : i32
    %c0_i32_0 = arith.constant 0 : i32
    %c0_i32_1 = arith.constant 0 : i32
    return %arg0, %c0_i32, %c0_i32_0 : i32, i32, i32
  }
  func.func @transform_1(%arg0: i32) -> (i32, i32) {
    %c0_i32 = arith.constant 0 : i32
    %c0_i32_0 = arith.constant 0 : i32
    %c0_i32_1 = arith.constant 0 : i32
    return %c0_i32, %c0_i32_0 : i32, i32
  }
  func.func @transform_2(%arg0: i32) -> (i32, i32) {
    %c0_i32 = arith.constant 0 : i32
    %c0_i32_0 = arith.constant 0 : i32
    %c0_i32_1 = arith.constant 0 : i32
    return %c0_i32, %c0_i32_0 : i32, i32
  }
  func.func @transform_3(%arg0: i32) -> (i32, i32) {
    %c0_i32 = arith.constant 0 : i32
    %c0_i32_0 = arith.constant 0 : i32
    return %arg0, %c0_i32 : i32, i32
  }
}

</mosaic_0001>

<llo_original>
// kernel: tpu_custom_call.1
$region0: #{tpu_custom_call.1}
  #allocation0 [shape = 'u32[]', space=smem, size = 0x4, offset = 0x4, fixed_abs, tag = 'smem constant byte address 0x4 - core index']
  #allocation1 [shape = 'u32[144,128]{1,0:T(1,128)}', space=vmem, size = 0x12000, scoped, tag = 'internal scratch']
  %s0 = inlined_call_operand.vmem [shape: f32[2,32,16], index: 0, kind: input, shape index: {}]
  %s1 = inlined_call_operand.vmem [shape: f32[32,128], index: 1, kind: input, shape index: {}]
  %s2 = inlined_call_operand.vmem [shape: f32[1,128], index: 2, kind: input, shape index: {}]
  %s3 = inlined_call_operand.hbm [shape: f32[2,128], index: 3, kind: output, shape index: {}]
  %s4 = sld [smem:[#allocation0]]
  $region22: #{tpu_custom_call.1} parent=0
    _
  %s6 = ssub.s32 1, %s4
  %s7 = scalar_select 0, %s6, %s4
  $region1: #{tpu_custom_call.1} parent=0
    #allocation2 [shape = 'u8[1024]{0}', space=vmem, size = 0x400, scoped, tag = 'output window, operand 0, single buffered']
    #allocation3 [shape = 's32[1]{0}', space=sflag, size = 0x4, scoped, tag = 'scoped memory for tpu_custom_call.1']
    %8 = vsyncpa [#allocation3], 0
    // Predicated region
    $region2: #{tpu_custom_call.1} parent=1 // pred_check
      _
    $region3: #{tpu_custom_call.1} parent=1 // pred_check_branch
      %10 = sbr.rel (0) target = $region5
    $region4: #{tpu_custom_call.1} parent=1 // pred_region
      _
    $region5: #{tpu_custom_call.1} parent=1 // pred_fallthru
      _
    // Predicated region
    $region6: #{tpu_custom_call.1} parent=1 // pred_check
      _
    $region7: #{tpu_custom_call.1} parent=1 // pred_check_branch
      %12 = sbr.rel (0) target = $region9
    $region8: #{tpu_custom_call.1} parent=1 // pred_region
      _
    $region9: #{tpu_custom_call.1} parent=1 // pred_fallthru
      _
    // Predicated region
    $region10: #{tpu_custom_call.1} parent=1 // pred_check
      _
    $region11: #{tpu_custom_call.1} parent=1 // pred_check_branch
      %14 = sbr.rel (0) target = $region13
    $region12: #{tpu_custom_call.1} parent=1 // pred_region
      _
    $region13: #{tpu_custom_call.1} parent=1 // pred_fallthru
      _
    %v15 = vld [vmem:[%s0] sm:$0xff]
    %v16 = vld [vmem:[%s0 + $0x8] sm:$0xff]
    %v17 = vld [vmem:[%s0 + $0x10] sm:$0xff]
    %v18 = vld [vmem:[%s0 + $0x18] sm:$0xff]
    %v19 = vld [vmem:[%s0 + $0x20] sm:$0xff]
    %v20 = vld [vmem:[%s0 + $0x28] sm:$0xff]
    %v21 = vld [vmem:[%s0 + $0x30] sm:$0xff]
    %v22 = vld [vmem:[%s0 + $0x38] sm:$0xff]
    %v23 = vmax.f32 %v15, 0.0
    %v24 = vmax.f32 %v16, 0.0
    %v25 = vmax.f32 %v17, 0.0
    %v26 = vmax.f32 %v18, 0.0
    %v27 = vmax.f32 %v19, 0.0
    %v28 = vmax.f32 %v20, 0.0
    %v29 = vmax.f32 %v21, 0.0
    %v30 = vmax.f32 %v22, 0.0
    %vm31 = vcmask 130048
    %v32 = vsel %vm31, %v23, 0.0
    %33 = vadd.xlane.f32.xlu0 %v32
    %v34 = vpop.xlane.xlu0 %33
    %v35 = vsel %vm31, %v24, 0.0
    %36 = vadd.xlane.f32.xlu0 %v35
    %v37 = vpop.xlane.xlu0 %36
    %v38 = vsel %vm31, %v25, 0.0
    %39 = vadd.xlane.f32.xlu0 %v38
    %v40 = vpop.xlane.xlu0 %39
    %v41 = vsel %vm31, %v26, 0.0
    %42 = vadd.xlane.f32.xlu0 %v41
    %v43 = vpop.xlane.xlu0 %42
    %v44 = vsel %vm31, %v27, 0.0
    %45 = vadd.xlane.f32.xlu0 %v44
    %v46 = vpop.xlane.xlu0 %45
    %v47 = vsel %vm31, %v28, 0.0
    %48 = vadd.xlane.f32.xlu0 %v47
    %v49 = vpop.xlane.xlu0 %48
    %v50 = vsel %vm31, %v29, 0.0
    %51 = vadd.xlane.f32.xlu0 %v50
    %v52 = vpop.xlane.xlu0 %51
    %v53 = vsel %vm31, %v30, 0.0
    %54 = vadd.xlane.f32.xlu0 %v53
    %v55 = vpop.xlane.xlu0 %54
    %v56 = vmul.f32 %v34, 0.0625
    %v57 = vmul.f32 %v37, 0.0625
    %v58 = vmul.f32 %v40, 0.0625
    %v59 = vmul.f32 %v43, 0.0625
    %v60 = vmul.f32 %v46, 0.0625
    %v61 = vmul.f32 %v49, 0.0625
    %v62 = vmul.f32 %v52, 0.0625
    %v63 = vmul.f32 %v55, 0.0625
    %v64 = vld [vmem:[%s1] sm:$0xff]
    %v65 = vld [vmem:[%s1 + $0x8] sm:$0xff]
    %v66 = vld [vmem:[%s1 + $0x10] sm:$0xff]
    %v67 = vld [vmem:[%s1 + $0x18] sm:$0xff]
    %v68 = vld [vmem:[%s2] sm:$0x1]
    %v70 = vlaneseq
    %v71 = vshrl.u32 %v70, 7
    %v72 = vsub.s32 0, %v71
    %v73 = vrot.slane %v68, %v72
    %v83 = vlaneseq
    %v84 = vand.u32 %v83, 127
    %v85 = vlaneseq
    %v86 = vshrl.u32 %v85, 7
    %v87 = vsub.s32 %v84, %v86
    %v88 = vrot.slane %v56, %v87
    %v89 = vadd.s32 %v84, 4294967288
    %v90 = vlaneseq
    %v91 = vshrl.u32 %v90, 7
    %v92 = vsub.s32 %v89, %v91
    %v93 = vrot.slane %v57, %v92
    %vm94 = vcmask 130112
    %v95 = vsel %vm94, %v93, %v88
    %v96 = vadd.s32 %v84, 4294967280
    %v97 = vlaneseq
    %v98 = vshrl.u32 %v97, 7
    %v99 = vsub.s32 %v96, %v98
    %v100 = vrot.slane %v58, %v99
    %vm101 = vcmask 195712
    %v102 = vsel %vm101, %v100, %v95
    %v103 = vadd.s32 %v84, 4294967272
    %v104 = vlaneseq
    %v105 = vshrl.u32 %v104, 7
    %v106 = vsub.s32 %v103, %v105
    %v107 = vrot.slane %v59, %v106
    %vm108 = vcmask 261312
    %v109 = vsel %vm108, %v107, %v102
    %v110 = vlaneseq
    %v111 = vshrl.u32 %v110, 7
    %v112 = vsub.s32 %v84, %v111
    %v113 = vrot.slane %v60, %v112
    %v114 = vlaneseq
    %v115 = vshrl.u32 %v114, 7
    %v116 = vsub.s32 %v89, %v115
    %v117 = vrot.slane %v61, %v116
    %v118 = vsel %vm94, %v117, %v113
    %v119 = vlaneseq
    %v120 = vshrl.u32 %v119, 7
    %v121 = vsub.s32 %v96, %v120
    %v122 = vrot.slane %v62, %v121
    %v123 = vsel %vm101, %v122, %v118
    %v124 = vlaneseq
    %v125 = vshrl.u32 %v124, 7
    %v126 = vsub.s32 %v103, %v125
    %v127 = vrot.slane %v63, %v126
    %v128 = vsel %vm108, %v127, %v123
    %vm129 = vcmask 1041409
    %v130 = vsel %vm129, %v128, %v109
    %vm131 = vcmask 261120
    %v132 = vsel %vm131, %v130, 0
    %134 = vmatprep.subr.mxu0 0.0
    %135 = vmatpush1.msra.mxu0 %v64
    %136 = vmatprep.subr.mxu0 0.0
    %137 = vmatpush1.msra.mxu0 %v65
    %138 = vmatprep.subr.mxu0 0.0
    %139 = vmatpush1.msra.mxu0 %v66
    %140 = vmatprep.subr.mxu0 0.0
    %141 = vmatpush1.msra.mxu0 %v67
    %142 = vmatprep.subr.mxu0 0.0
    %143 = vmatpush1.msra.mxu0 0.0
    %144 = vmatprep.subr.mxu0 0.0
    %145 = vmatpush1.msra.mxu0 0.0
    %146 = vmatprep.subr.mxu0 0.0
    %147 = vmatpush1.msra.mxu0 0.0
    %148 = vmatprep.subr.mxu0 0.0
    %149 = vmatpush1.msra.mxu0 0.0
    %150 = vmatprep.subr.mxu0 0.0
    %151 = vmatpush1.msra.mxu0 0.0
    %152 = vmatprep.subr.mxu0 0.0
    %153 = vmatpush1.msra.mxu0 0.0
    %154 = vmatprep.subr.mxu0 0.0
    %155 = vmatpush1.msra.mxu0 0.0
    %156 = vmatprep.subr.mxu0 0.0
    %157 = vmatpush1.msra.mxu0 0.0
    %158 = vmatprep.subr.mxu0 0.0
    %159 = vmatpush1.msra.mxu0 0.0
    %160 = vmatprep.subr.mxu0 0.0
    %161 = vmatpush1.msra.mxu0 0.0
    %162 = vmatprep.subr.mxu0 0.0
    %163 = vmatpush1.msra.mxu0 0.0
    %164 = vmatprep.subr.mxu0 0.0
    %165 = vmatpush1.msra.mxu0 0.0
    %166 = vmatprep.subr.mxu0 0.0
    %167 = vmatpush1.msra.mxu0 0.0
    %168 = vmatprep.subr.mxu0 0.0
    %169 = vmatpush1.msra.mxu0 0.0
    %170 = vmatprep.subr.mxu0 0.0
    %171 = vmatpush1.msra.mxu0 0.0
    %172 = vmatprep.subr.mxu0 0.0
    %173 = vmatpush1.msra.mxu0 0.0
    %174 = vmatprep.subr.mxu0 0.0
    %175 = vmatpush1.msra.mxu0 0.0
    %176 = vmatprep.subr.mxu0 0.0
    %177 = vmatpush1.msra.mxu0 0.0
    %178 = vmatprep.subr.mxu0 0.0
    %179 = vmatpush1.msra.mxu0 0.0
    %180 = vmatprep.subr.mxu0 0.0
    %181 = vmatpush1.msra.mxu0 0.0
    %182 = vmatprep.subr.mxu0 0.0
    %183 = vmatpush1.msra.mxu0 0.0
    %184 = vmatprep.subr.mxu0 0.0
    %185 = vmatpush1.msra.mxu0 0.0
    %186 = vmatprep.subr.mxu0 0.0
    %187 = vmatpush1.msra.mxu0 0.0
    %188 = vmatprep.subr.mxu0 0.0
    %189 = vmatpush1.msra.mxu0 0.0
    %190 = vmatprep.subr.mxu0 0.0
    %191 = vmatpush1.msra.mxu0 0.0
    %192 = vmatprep.subr.mxu0 0.0
    %193 = vmatpush1.msra.mxu0 0.0
    %194 = vmatprep.subr.mxu0 0.0
    %195 = vmatpush1.msra.mxu0 0.0
    %196 = vmatprep.subr.mxu0 0.0
    %197 = vmatpush1.msra.mxu0 0.0
    %198 = vmatprep.mubr.f32.mxu0 0.0
    %199 = vmatmul.mubr.f32.gmra.mrb[0].mxu0 %v132
    %v200 = vpop.f32.mrb[0].mxu0
    %v201 = vadd.f32 %v73, %v200
    %v202 = vpop.f32.mrb[0].mxu0
    %203 = vdwg.mxu0
    %204 = vst [vmem:[#allocation2] sm:$0x3] %v201
    // Predicated region
    $region14: #{tpu_custom_call.1} parent=1 // pred_check
      _
    $region15: #{tpu_custom_call.1} parent=1 // pred_check_branch
      %206 = sbr.rel (0) target = $region17
    $region16: #{tpu_custom_call.1} parent=1 // pred_region
      %s208 = ssub.s32 32, 32
      %209 = vsyncadd [#allocation3], %s208
      %s211 = sshll.u32 [#allocation2], 4
      %s212 = int_to_ptr.vmem [resolvable:$true] %s211
      %214 = dma.vmem_to_hbm [thread:$0]  %s212, 32, %s3, [#allocation3]
    $region17: #{tpu_custom_call.1} parent=1 // pred_fallthru
      _
    // Predicated region
    $region18: #{tpu_custom_call.1} parent=1 // pred_check
      _
    $region19: #{tpu_custom_call.1} parent=1 // pred_check_branch
      %216 = sbr.rel (0) target = $region21
    $region20: #{tpu_custom_call.1} parent=1 // pred_region
      %217 = dma.done [#allocation3], 32
    $region21: #{tpu_custom_call.1} parent=1 // pred_fallthru
      _
    %218 = vsyncpa [#allocation3], 1

</llo_original>
